<compile_context>
chip_gen: v5e
topology: v5e:2x2
jax: 0.10.0
libtpu: 0.0.40
codegen_flags: <defaults>
</compile_context>

<pallas_src>
import functools
import math

import jax
import jax.numpy as jnp
from jax import lax
from jax.experimental import pallas as pl
from jax.experimental.pallas import tpu as pltpu


# ----------------------------------------------------------------------------
# Pallas kernel: tiled bf16 matmul with fused bias + optional Mish epilogue
# ----------------------------------------------------------------------------
def _mm_bias_act_kernel(a_ref, b_ref, bias_ref, o_ref, acc_ref, *, act):
    @pl.when(pl.program_id(2) == 0)
    def _init():
        acc_ref[...] = jnp.zeros_like(acc_ref)

    acc_ref[...] += jnp.dot(a_ref[...], b_ref[...],
                            preferred_element_type=jnp.float32)

    @pl.when(pl.program_id(2) == pl.num_programs(2) - 1)
    def _fin():
        y = acc_ref[...] + bias_ref[...]
        if act == "mish":
            # mish(y) = y * tanh(softplus(y)) = y * (t - 1) / (t + 1),
            # with t = (1 + e^y)^2.  Clamp the exponent so t stays finite;
            # for y > 30 the ratio is 1 to f32 precision, so mish(y) == y.
            t = 1.0 + jnp.exp(jnp.minimum(y, 30.0))
            t = t * t
            y = y * (t - 1.0) * pl.reciprocal(t + 1.0, approx=True)
        o_ref[...] = y.astype(o_ref.dtype)


def _round_up(x, m):
    return (x + m - 1) // m * m


def matmul_bias_act(a, b, bias, *, act="none", out_dtype=jnp.float32):
    """out[:M,:N] = act((a @ b) + bias); a/b fed to the MXU in bf16."""
    M, K = a.shape
    Kb, N = b.shape
    assert K == Kb, (K, Kb)

    # Tile sizes: large K/N tiles for 256-wide MXUs, TM capped at 256 so a
    # moderately sized M still yields >=2 tiles on a parallel axis (dual TC).
    TM = min(256, _round_up(M, 128))
    TN = min(256, _round_up(N, 128))
    TK = min(512, _round_up(K, 128))
    Mp, Kp, Np = _round_up(M, TM), _round_up(K, TK), _round_up(N, TN)

    a_p = jnp.pad(a.astype(jnp.bfloat16), ((0, Mp - M), (0, Kp - K)))
    b_p = jnp.pad(b.astype(jnp.bfloat16), ((0, Kp - K), (0, Np - N)))
    bias_p = jnp.pad(bias.astype(jnp.float32).reshape(1, N),
                     ((0, 0), (0, Np - N)))

    grid = (Mp // TM, Np // TN, Kp // TK)
    out = pl.pallas_call(
        functools.partial(_mm_bias_act_kernel, act=act),
        out_shape=jax.ShapeDtypeStruct((Mp, Np), out_dtype),
        grid_spec=pltpu.PrefetchScalarGridSpec(
            num_scalar_prefetch=0,
            grid=grid,
            in_specs=[
                pl.BlockSpec((TM, TK), lambda i, j, k: (i, k)),
                pl.BlockSpec((TK, TN), lambda i, j, k: (k, j)),
                pl.BlockSpec((1, TN), lambda i, j, k: (0, j)),
            ],
            out_specs=pl.BlockSpec((TM, TN), lambda i, j, k: (i, j)),
            scratch_shapes=[pltpu.VMEM((TM, TN), jnp.float32)],
        ),
        compiler_params=pltpu.CompilerParams(
            dimension_semantics=("parallel", "parallel", "arbitrary"),
            vmem_limit_bytes=32 * 1024 * 1024,
        ),
    )(a_p, b_p, bias_p)
    return out[:M, :N]


# ----------------------------------------------------------------------------
# JAX glue: im2col (kept outside the kernel; patches are produced in bf16)
# ----------------------------------------------------------------------------
def extract_patches(x, k, stride, dilation, pad):
    """x: NHWC -> ([N, Ho, Wo, k*k*C] patch tensor, Ho, Wo)."""
    if pad > 0:
        x = jnp.pad(x, ((0, 0), (pad, pad), (pad, pad), (0, 0)))
    _, H, W, _ = x.shape
    eff = dilation * (k - 1) + 1
    Ho = (H - eff) // stride + 1
    Wo = (W - eff) // stride + 1
    cols = []
    for i in range(k):
        for j in range(k):
            sl = x[:, i * dilation: i * dilation + (Ho - 1) * stride + 1: stride,
                     j * dilation: j * dilation + (Wo - 1) * stride + 1: stride, :]
            cols.append(sl)
    return jnp.concatenate(cols, axis=-1), Ho, Wo


# ----------------------------------------------------------------------------
# SimpleConv forward (Pallas path) and pure-JAX reference
# ----------------------------------------------------------------------------
_BN_EPS = 1e-5


@functools.partial(
    jax.jit,
    static_argnames=("kernel_size", "stride", "padding", "dilation",
                     "use_activation"))
def simple_conv_forward(params, x_nchw, *, kernel_size, stride=1, padding=0,
                        dilation=1, use_activation=True):
    cout, cin, kh, kw = params["w"].shape

    # Fold BN (inference mode) into the GEMM: scale into the weight columns,
    # everything else into a single per-channel bias.
    scale = params["gamma"] / jnp.sqrt(params["running_var"] + _BN_EPS)
    w_mat = jnp.transpose(params["w"], (2, 3, 1, 0)).reshape(kh * kw * cin, cout)
    w_folded = w_mat * scale[None, :]
    conv_b = (params["conv_bias"] if params["conv_bias"] is not None
              else jnp.zeros((cout,), jnp.float32))
    fused_bias = params["beta"] + scale * (conv_b - params["running_mean"])

    x = jnp.transpose(x_nchw, (0, 2, 3, 1)).astype(jnp.bfloat16)  # NCHW->NHWC
    n = x.shape[0]
    patches, ho, wo = extract_patches(x, kernel_size, stride, dilation, padding)
    a = patches.reshape(n * ho * wo, kh * kw * cin)

    y = matmul_bias_act(a, w_folded, fused_bias,
                        act="mish" if use_activation else "none",
                        out_dtype=jnp.float32)
    y = y.reshape(n, ho, wo, cout)
    return jnp.transpose(y, (0, 3, 1, 2))  # NHWC -> NCHW


def simple_conv_reference(params, x_nchw, *, kernel_size, stride=1, padding=0,
                          dilation=1, use_activation=True):
    del kernel_size  # implied by the weight shape
    y = lax.conv_general_dilated(
        x_nchw, params["w"],
        window_strides=(stride, stride),
        padding=((padding, padding), (padding, padding)),
        rhs_dilation=(dilation, dilation),
        dimension_numbers=("NCHW", "OIHW", "NCHW"))
    if params["conv_bias"] is not None:
        y = y + params["conv_bias"][None, :, None, None]
    scale = params["gamma"] / jnp.sqrt(params["running_var"] + _BN_EPS)
    y = ((y - params["running_mean"][None, :, None, None])
         * scale[None, :, None, None]
         + params["beta"][None, :, None, None])
    if use_activation:
        y = y * jnp.tanh(jax.nn.softplus(y))
    return y


def init_simple_conv_params(key, cin, cout, k, bias):
    ks = jax.random.split(key, 6)
    w = jax.random.normal(ks[0], (cout, cin, k, k), jnp.float32) / math.sqrt(cin * k * k)
    conv_b = (0.05 * jax.random.normal(ks[1], (cout,), jnp.float32)
              if bias else None)
    gamma = 1.0 + 0.1 * jax.random.normal(ks[2], (cout,), jnp.float32)
    beta = 0.1 * jax.random.normal(ks[3], (cout,), jnp.float32)
    mean = 0.1 * jax.random.normal(ks[4], (cout,), jnp.float32)
    var = jax.nn.softplus(jax.random.normal(ks[5], (cout,), jnp.float32)) + 0.5
    return {"w": w, "conv_bias": conv_b, "gamma": gamma, "beta": beta,
            "running_mean": mean, "running_var": var}


# ----------------------------------------------------------------------------
if __name__ == "__main__":
    key = jax.random.PRNGKey(0)
    kx, kp1, kp2 = jax.random.split(key, 3)

    N, Cin, H, W, Cout = 2, 4, 16, 16, 64
    x = jax.random.normal(kx, (N, Cin, H, W), jnp.float32)

    # Config 1: 3x3, stride 1, pad 1, no conv bias, Mish activation.
    p1 = init_simple_conv_params(kp1, Cin, Cout, 3, bias=False)
    out1 = jax.block_until_ready(
        simple_conv_forward(p1, x, kernel_size=3, stride=1, padding=1,
                            dilation=1, use_activation=True))
    ref1 = simple_conv_reference(p1, x, kernel_size=3, stride=1, padding=1,
                                 dilation=1, use_activation=True)
    assert out1.shape == (N, Cout, H, W), out1.shape
    assert bool(jnp.all(jnp.isfinite(out1)))
    err1 = float(jnp.max(jnp.abs(out1 - ref1)))
    assert err1 < 1e-1, f"config1 max abs err {err1}"

    # Config 2: 3x3, stride 2, dilation 2, pad 2, conv bias, no activation.
    p2 = init_simple_conv_params(kp2, Cin, Cout, 3, bias=True)
    out2 = jax.block_until_ready(
        simple_conv_forward(p2, x, kernel_size=3, stride=2, padding=2,
                            dilation=2, use_activation=False))
    ref2 = simple_conv_reference(p2, x, kernel_size=3, stride=2, padding=2,
                                 dilation=2, use_activation=False)
    assert out2.shape == ref2.shape, (out2.shape, ref2.shape)
    assert bool(jnp.all(jnp.isfinite(out2)))
    err2 = float(jnp.max(jnp.abs(out2 - ref2)))
    assert err2 < 1e-1, f"config2 max abs err {err2}"

    print("KERNEL_OK")
</pallas_src>

<mosaic_0001>
module attributes {stable_mosaic.version = 11 : i64} {
  func.func @_mm_bias_act_kernel(%arg0: i32, %arg1: i32, %arg2: i32, %arg3: memref<256x128xbf16, #tpu.memory_space<vmem>>, %arg4: memref<128x128xbf16, #tpu.memory_space<vmem>>, %arg5: memref<1x128xf32, #tpu.memory_space<vmem>>, %arg6: memref<256x128xf32, #tpu.memory_space<vmem>>, %arg7: memref<256x128xf32, #tpu.memory_space<vmem>>) attributes {dimension_semantics = [#tpu.dimension_semantics<parallel>, #tpu.dimension_semantics<parallel>, #tpu.dimension_semantics<arbitrary>], iteration_bounds = array<i64: 2, 1, 1>, scalar_prefetch = 0 : i64, scratch_operands = 1 : i64, tpu.core_type = #tpu.core_type<tc>, window_params = [{transform_indices = @transform_0, window_bounds = array<i64: 256, 128>}, {transform_indices = @transform_1, window_bounds = array<i64: 128, 128>}, {transform_indices = @transform_2, window_bounds = array<i64: 1, 128>}, {transform_indices = @transform_3, window_bounds = array<i64: 256, 128>}]} {
    %c0_i32 = arith.constant 0 : i32
    %0 = arith.cmpi eq, %arg2, %c0_i32 : i32
    %1 = arith.extui %0 : i1 to i32
    %c0_i32_0 = arith.constant 0 : i32
    %2 = arith.cmpi ne, %1, %c0_i32_0 : i32
    scf.if %2 {
      %cst_10 = arith.constant 0.000000e+00 : f32
      %12 = vector.broadcast %cst_10 : f32 to vector<256x128xf32>
      %c0_11 = arith.constant 0 : index
      %c0_12 = arith.constant 0 : index
      %13 = vector.load %arg7[%c0_11, %c0_12] : memref<256x128xf32, #tpu.memory_space<vmem>>, vector<256x128xf32>
      tpu.vector_store %arg7[%c0_11, %c0_12], %12 {strides = array<i32>} : memref<256x128xf32, #tpu.memory_space<vmem>>, vector<256x128xf32>,
    } else {
    }
    %c0 = arith.constant 0 : index
    %c0_1 = arith.constant 0 : index
    %3 = vector.load %arg7[%c0, %c0_1] : memref<256x128xf32, #tpu.memory_space<vmem>>, vector<256x128xf32>
    %c0_2 = arith.constant 0 : index
    %c0_3 = arith.constant 0 : index
    %4 = vector.load %arg3[%c0_2, %c0_3] : memref<256x128xbf16, #tpu.memory_space<vmem>>, vector<256x128xbf16>
    %c0_4 = arith.constant 0 : index
    %c0_5 = arith.constant 0 : index
    %5 = vector.load %arg4[%c0_4, %c0_5] : memref<128x128xbf16, #tpu.memory_space<vmem>>, vector<128x128xbf16>
    %cst = arith.constant dense<0.000000e+00> : vector<256x128xf32>
    %6 = tpu.matmul %4, %5, %cst {dimension_numbers = #tpu.dot_dimension_numbers<[1], [0], [0], [1], [0, 0, 1, 1], [], []>} : vector<256x128xbf16>, vector<128x128xbf16>, vector<256x128xf32> -> vector<256x128xf32>
    %7 = arith.addf %3, %6 : vector<256x128xf32>
    %c0_6 = arith.constant 0 : index
    %c0_7 = arith.constant 0 : index
    %8 = vector.load %arg7[%c0_6, %c0_7] : memref<256x128xf32, #tpu.memory_space<vmem>>, vector<256x128xf32>
    tpu.vector_store %arg7[%c0_6, %c0_7], %7 {strides = array<i32>} : memref<256x128xf32, #tpu.memory_space<vmem>>, vector<256x128xf32>,
    %c0_i32_8 = arith.constant 0 : i32
    %9 = arith.cmpi eq, %arg2, %c0_i32_8 : i32
    %10 = arith.extui %9 : i1 to i32
    %c0_i32_9 = arith.constant 0 : i32
    %11 = arith.cmpi ne, %10, %c0_i32_9 : i32
    scf.if %11 {
      %c0_10 = arith.constant 0 : index
      %c0_11 = arith.constant 0 : index
      %12 = vector.load %arg7[%c0_10, %c0_11] : memref<256x128xf32, #tpu.memory_space<vmem>>, vector<256x128xf32>
      %c0_12 = arith.constant 0 : index
      %c0_13 = arith.constant 0 : index
      %13 = vector.load %arg5[%c0_12, %c0_13] : memref<1x128xf32, #tpu.memory_space<vmem>>, vector<1x128xf32>
      %14 = vector.broadcast %13 : vector<1x128xf32> to vector<256x128xf32>
      %15 = arith.addf %12, %14 : vector<256x128xf32>
      %cst_14 = arith.constant 3.000000e+01 : f32
      %16 = vector.broadcast %cst_14 : f32 to vector<256x128xf32>
      %17 = arith.minimumf %15, %16 : vector<256x128xf32>
      %18 = math.exp %17 : vector<256x128xf32>
      %cst_15 = arith.constant 1.000000e+00 : f32
      %19 = vector.broadcast %cst_15 : f32 to vector<256x128xf32>
      %20 = arith.addf %19, %18 : vector<256x128xf32>
      %21 = arith.mulf %20, %20 : vector<256x128xf32>
      %cst_16 = arith.constant 1.000000e+00 : f32
      %22 = vector.broadcast %cst_16 : f32 to vector<256x128xf32>
      %23 = arith.subf %21, %22 : vector<256x128xf32>
      %24 = arith.mulf %15, %23 : vector<256x128xf32>
      %cst_17 = arith.constant 1.000000e+00 : f32
      %25 = vector.broadcast %cst_17 : f32 to vector<256x128xf32>
      %26 = arith.addf %21, %25 : vector<256x128xf32>
      %27 = tpu.reciprocal %26 {approx = true} : vector<256x128xf32> -> vector<256x128xf32>
      %28 = arith.mulf %24, %27 : vector<256x128xf32>
      %c0_18 = arith.constant 0 : index
      %c0_19 = arith.constant 0 : index
      %29 = vector.load %arg6[%c0_18, %c0_19] : memref<256x128xf32, #tpu.memory_space<vmem>>, vector<256x128xf32>
      tpu.vector_store %arg6[%c0_18, %c0_19], %28 {strides = array<i32>} : memref<256x128xf32, #tpu.memory_space<vmem>>, vector<256x128xf32>,
    } else {
    }
    return
  }
  func.func @transform_0(%arg0: i32, %arg1: i32, %arg2: i32) -> (i32, i32) {
    %c0_i32 = arith.constant 0 : i32
    return %arg0, %arg2 : i32, i32
  }
  func.func @transform_1(%arg0: i32, %arg1: i32, %arg2: i32) -> (i32, i32) {
    %c0_i32 = arith.constant 0 : i32
    return %arg2, %arg1 : i32, i32
  }
  func.func @transform_2(%arg0: i32, %arg1: i32, %arg2: i32) -> (i32, i32) {
    %c0_i32 = arith.constant 0 : i32
    %c0_i32_0 = arith.constant 0 : i32
    return %c0_i32, %arg1 : i32, i32
  }
  func.func @transform_3(%arg0: i32, %arg1: i32, %arg2: i32) -> (i32, i32) {
    %c0_i32 = arith.constant 0 : i32
    return %arg0, %arg1 : i32, i32
  }
}

</mosaic_0001>

<llo_original>
// kernel: simple_conv_forward.1
$region0: #{simple_conv_forward.1}
  #allocation0 [shape = 'u32[]', space=smem, size = 0x4, offset = 0x4, fixed_abs, tag = 'smem constant byte address 0x4 - core index']
  #allocation1 [shape = 'u32[72,128]{1,0:T(1,128)}', space=vmem, size = 0x9000, scoped, tag = 'internal scratch']
  #allocation2 [shape = 'f32[256,128]{1,0:T(8,128)}', space=vmem, size = 0x20000, scoped, tag = 'scratch operand']
  %s0 = inlined_call_operand.vmem [shape: bf16[512,128], index: 0, kind: input, shape index: {}]
  %s1 = inlined_call_operand.vmem [shape: bf16[128,128], index: 1, kind: input, shape index: {}]
  %s2 = inlined_call_operand.vmem [shape: f32[1,128], index: 2, kind: input, shape index: {}]
  %s3 = inlined_call_operand.hbm [shape: f32[512,128], index: 3, kind: output, shape index: {}]
  %s4 = sld [smem:[#allocation0]]
  $region53: #{simple_conv_forward.1} parent=0
    _
  %s6 = ssub.s32 1, %s4
  %s7 = scalar_select 0, %s6, %s4
  $region1: #{simple_conv_forward.1} parent=0
    #allocation3 [shape = 'u8[262144]{0}', space=vmem, size = 0x40000, scoped, tag = 'output window, operand 0']
    #allocation4 [shape = 's32[2]{0}', space=sflag, size = 0x8, scoped, tag = 'scoped memory for simple_conv_forward.1']
    %8 = vsyncpa [#allocation4], 0
    %s9 = scalar_lea.sflag [#allocation4], 1
    %10 = vsyncpa %s9, 0
    loop: start=0, step=1, limit=4
    $region2: #{simple_conv_forward.1} parent=1 // loop_pre_header
      _
    $region3: #{simple_conv_forward.1} parent=1 // loop_header
      %s12 = sphi 0, %s16
      %p13 = scmp.ge.s32.totalorder %s12, 4
      %s19 = sphi 0, %s38
      %s20 = sphi 0, %s34
      %s21 = sphi 0, %s30
      %s22 = sphi 0, %s19
      %s23 = sphi 0, %s20
      %s24 = sphi 0, %s21
      %s25 = sphi 0, %s22
      %s26 = sphi 0, %s23
      %s27 = sphi 0, %s24
      %s43 = sphi 0, %s45
      %s46 = sphi 0, %s43
      %s47 = sphi 0, %s46
      %s63 = sphi 0, %s47
      %s71 = sphi 0, %s73
      %s74 = sphi 0, %s71
      %s75 = sphi 0, %s74
      %s91 = sphi 0, %s75
      %s97 = sphi 0, %s99
      %s100 = sphi 0, %s97
      %s101 = sphi 0, %s100
      %s117 = sphi 0, %s101
      %s125 = sphi 0, %s127
      %s128 = sphi 0, %s125
      %s129 = sphi 0, %s128
      %s145 = sphi 0, %s129
    $region4: #{simple_conv_forward.1} parent=1 // loop_header_branch
      %15 = sbr.rel (%p13) target = $region8
    $region5: #{simple_conv_forward.1} parent=1 // loop_body
      %s17 = ssub.s32 %s12, 1
      %s18 = ssub.s32 %s12, 2
      %s28 = sadd.s32 1, %s21
      %p29 = scmp.ge.s32.totalorder %s28, 1
      %s30 = scalar_select %p29, 0, %s28
      %s31 = sadd.s32 1, %s20
      %s32 = scalar_select %p29, %s31, %s20
      %p33 = scmp.ge.s32.totalorder %s32, 1
      %s34 = scalar_select %p33, 0, %s32
      %s35 = sadd.s32 1, %s19
      %s36 = scalar_select %p33, %s35, %s19
      %p37 = scmp.ge.s32.totalorder %s36, 2
      %s38 = scalar_select %p37, 0, %s36
      %s39 = ssub.s32 %s19, %s38
      %s40 = ssub.s32 %s21, %s30
      %s41 = sor.u32 %s39, %s40
      %p42 = scmp.eq.s32.totalorder %s41, 0
      %s44 = sadd.s32 %s43, 1
      %s45 = scalar_select %p42, %s43, %s44
      %p48 = pneg %p42
      %p49 = scmp.eq.s32.totalorder %s12, 1
      %p50 = por %p48, %p49
      %p51 = scmp.ne.s32.totalorder %s43, %s46
      %p52 = scmp.eq.s32.totalorder %s12, 0
      %p53 = por %p51, %p52
      %p54 = scmp.ne.s32.totalorder %s43, %s46
      %p55 = scmp.eq.s32.totalorder %s17, 1
      %p56 = por %p54, %p55
      %p57 = scmp.ne.s32.totalorder %s46, %s47
      %p58 = scmp.eq.s32.totalorder %s17, 0
      %p59 = por %p57, %p58
      %p60 = scmp.ne.s32.totalorder %s46, %s47
      %p61 = scmp.eq.s32.totalorder %s18, 1
      %p62 = por %p60, %p61
      %p64 = scmp.ne.s32.totalorder %s47, %s63
      %p65 = scmp.eq.s32.totalorder %s18, 0
      %p66 = por %p64, %p65
      %s67 = ssub.s32 %s21, %s30
      %s68 = ssub.s32 %s20, %s34
      %s69 = sor.u32 %s67, %s68
      %p70 = scmp.eq.s32.totalorder %s69, 0
      %s72 = sadd.s32 %s71, 1
      %s73 = scalar_select %p70, %s71, %s72
      %p76 = pneg %p70
      %p77 = scmp.eq.s32.totalorder %s12, 1
      %p78 = por %p76, %p77
      %p79 = scmp.ne.s32.totalorder %s71, %s74
      %p80 = scmp.eq.s32.totalorder %s12, 0
      %p81 = por %p79, %p80
      %p82 = scmp.ne.s32.totalorder %s71, %s74
      %p83 = scmp.eq.s32.totalorder %s17, 1
      %p84 = por %p82, %p83
      %p85 = scmp.ne.s32.totalorder %s74, %s75
      %p86 = scmp.eq.s32.totalorder %s17, 0
      %p87 = por %p85, %p86
      %p88 = scmp.ne.s32.totalorder %s74, %s75
      %p89 = scmp.eq.s32.totalorder %s18, 1
      %p90 = por %p88, %p89
      %p92 = scmp.ne.s32.totalorder %s75, %s91
      %p93 = scmp.eq.s32.totalorder %s18, 0
      %p94 = por %p92, %p93
      %s95 = ssub.s32 %s20, %s34
      %p96 = scmp.eq.s32.totalorder %s95, 0
      %s98 = sadd.s32 %s97, 1
      %s99 = scalar_select %p96, %s97, %s98
      %p102 = pneg %p96
      %p103 = scmp.eq.s32.totalorder %s12, 1
      %p104 = por %p102, %p103
      %p105 = scmp.ne.s32.totalorder %s97, %s100
      %p106 = scmp.eq.s32.totalorder %s12, 0
      %p107 = por %p105, %p106
      %p108 = scmp.ne.s32.totalorder %s97, %s100
      %p109 = scmp.eq.s32.totalorder %s17, 1
      %p110 = por %p108, %p109
      %p111 = scmp.ne.s32.totalorder %s100, %s101
      %p112 = scmp.eq.s32.totalorder %s17, 0
      %p113 = por %p111, %p112
      %p114 = scmp.ne.s32.totalorder %s100, %s101
      %p115 = scmp.eq.s32.totalorder %s18, 1
      %p116 = por %p114, %p115
      %p118 = scmp.ne.s32.totalorder %s101, %s117
      %p119 = scmp.eq.s32.totalorder %s18, 0
      %p120 = por %p118, %p119
      %s121 = ssub.s32 %s19, %s38
      %s122 = ssub.s32 %s20, %s34
      %s123 = sor.u32 %s121, %s122
      %p124 = scmp.eq.s32.totalorder %s123, 0
      %s126 = sadd.s32 %s125, 1
      %s127 = scalar_select %p124, %s125, %s126
      %p130 = pneg %p124
      %p131 = scmp.eq.s32.totalorder %s12, 1
      %p132 = por %p130, %p131
      %p133 = scmp.ne.s32.totalorder %s125, %s128
      %p134 = scmp.eq.s32.totalorder %s12, 0
      %p135 = por %p133, %p134
      %p136 = scmp.ne.s32.totalorder %s125, %s128
      %p137 = scmp.eq.s32.totalorder %s17, 1
      %p138 = por %p136, %p137
      %p139 = scmp.ne.s32.totalorder %s128, %s129
      %p140 = scmp.eq.s32.totalorder %s17, 0
      %p141 = por %p139, %p140
      %p142 = scmp.ne.s32.totalorder %s128, %s129
      %p143 = scmp.eq.s32.totalorder %s18, 1
      %p144 = por %p142, %p143
      %p146 = scmp.ne.s32.totalorder %s129, %s145
      %p147 = scmp.eq.s32.totalorder %s18, 0
      %p148 = por %p146, %p147
      %p149 = scmp.le.s32.totalorder 1, %s12
      %p150 = scmp.lt.s32.totalorder %s12, 3
      %p151 = pnand %p149, %p150
      %p152 = pneg %p151
      // Predicated region
      $region9: #{simple_conv_forward.1} parent=5 // pred_check
        _
      $region10: #{simple_conv_forward.1} parent=5 // pred_check_branch
        %154 = sbr.rel (%p151) target = $region12
      $region11: #{simple_conv_forward.1} parent=5 // pred_region
        %s155 = ssub.s32 %s12, 1
        // Predicated region
        $region13: #{simple_conv_forward.1} parent=11 // pred_check
          %p156 = pneg %p87
        $region14: #{simple_conv_forward.1} parent=11 // pred_check_branch
          %158 = sbr.rel (%p156) target = $region16
        $region15: #{simple_conv_forward.1} parent=11 // pred_region
          %s159 = smul.u32 16, %s24
          %p160 = scmp.lt.s32.totalorder %s159, 15
          %s161 = scalar_select %p160, %s159, 15
          %p162 = scmp.lt.s32.totalorder %s23, 0
          %s163 = scalar_select %p162, %s23, 0
          %s164 = sadd.s32 %s163, %s161
          %s165 = smul.addr %s164, 4
          %s166 = scalar_lea.vmem %s1, %s165
          %s167 = smul.u32 16, %s24
        $region16: #{simple_conv_forward.1} parent=11 // pred_fallthru
          _
        // Predicated region
        $region17: #{simple_conv_forward.1} parent=11 // pred_check
          %p168 = pneg %p113
        $region18: #{simple_conv_forward.1} parent=11 // pred_check_branch
          %170 = sbr.rel (%p168) target = $region20
        $region19: #{simple_conv_forward.1} parent=11 // pred_region
          %p171 = scmp.lt.s32.totalorder %s23, 0
          %s172 = scalar_select %p171, %s23, 0
          %s173 = scalar_lea.vmem %s2, %s172
        $region20: #{simple_conv_forward.1} parent=11 // pred_fallthru
          _
      $region12: #{simple_conv_forward.1} parent=5 // pred_fallthru
        _
      %p174 = scmp.lt.s32.totalorder %s12, 2
      // Predicated region
      $region21: #{simple_conv_forward.1} parent=5 // pred_check
        %p175 = pneg %p174
      $region22: #{simple_conv_forward.1} parent=5 // pred_check_branch
        %177 = sbr.rel (%p175) target = $region24
      $region23: #{simple_conv_forward.1} parent=5 // pred_region
        // Predicated region
        $region25: #{simple_conv_forward.1} parent=23 // pred_check
          %p178 = pneg %p53
        $region26: #{simple_conv_forward.1} parent=23 // pred_check_branch
          %180 = sbr.rel (%p178) target = $region28
        $region27: #{simple_conv_forward.1} parent=23 // pred_region
          %s181 = smul.u32 32, %s19
          %p182 = scmp.lt.s32.totalorder %s181, 63
          %s183 = scalar_select %p182, %s181, 63
          %p184 = scmp.lt.s32.totalorder %s21, 0
          %s185 = scalar_select %p184, %s21, 0
          %s186 = sadd.s32 %s185, %s183
          %s187 = smul.addr %s186, 4
          %s188 = scalar_lea.vmem %s0, %s187
          %s189 = smul.u32 32, %s19
        $region28: #{simple_conv_forward.1} parent=23 // pred_fallthru
          _
      $region24: #{simple_conv_forward.1} parent=5 // pred_fallthru
        _
      %p190 = scmp.le.s32.totalorder 1, %s12
      %p191 = scmp.lt.s32.totalorder %s12, 3
      %p192 = pnand %p190, %p191
      %p193 = pneg %p192
      // Predicated region
      $region29: #{simple_conv_forward.1} parent=5 // pred_check
        _
      $region30: #{simple_conv_forward.1} parent=5 // pred_check_branch
        %195 = sbr.rel (%p192) target = $region32
      $region31: #{simple_conv_forward.1} parent=5 // pred_region
        %s196 = ssub.s32 %s12, 1
        %s197 = smul.u32 32, %s22
        %p198 = scmp.lt.s32.totalorder %s197, 63
        %s199 = scalar_select %p198, %s197, 63
        %p200 = scmp.lt.s32.totalorder %s24, 0
        %s201 = scalar_select %p200, %s24, 0
        %s202 = sadd.s32 %s201, %s199
        %s203 = smul.addr %s202, 4
        %s204 = scalar_lea.vmem %s0, %s203
        %p205 = pneg %p59
        %p206 = pneg %p56
        %s207 = smul.u32 16, %s24
        %p208 = scmp.lt.s32.totalorder %s207, 15
        %s209 = scalar_select %p208, %s207, 15
        %p210 = scmp.lt.s32.totalorder %s23, 0
        %s211 = scalar_select %p210, %s23, 0
        %s212 = sadd.s32 %s211, %s209
        %s213 = smul.addr %s212, 4
        %s214 = scalar_lea.vmem %s1, %s213
        %p215 = pneg %p87
        %p216 = pneg %p84
        %p217 = scmp.lt.s32.totalorder %s23, 0
        %s218 = scalar_select %p217, %s23, 0
        %s219 = scalar_lea.vmem %s2, %s218
        %p220 = pneg %p113
        %p221 = pneg %p110
        %p222 = pneg %p141
        %p223 = pneg %p138
        %s224 = sand.u32 %s128, 1
        %s225 = scalar_lea.sflag [#allocation4], %s224
        %s226 = sand.u32 %s128, 1
        %s227 = smul.addr %s226, 256
        %s228 = scalar_lea.vmem [#allocation3], %s227
        %s229 = smul.u32 32, %s22
        %p230 = scmp.lt.s32.totalorder %s229, 63
        %s231 = scalar_select %p230, %s229, 63
        %p232 = scmp.lt.s32.totalorder %s24, 0
        %s233 = scalar_select %p232, %s24, 0
        %s234 = sadd.s32 %s233, %s231
        %s235 = smul.addr %s234, 4
        %s236 = scalar_lea.vmem %s0, %s235
        %s237 = smul.u32 32, %s22
        %s238 = smul.u32 16, %s24
        %p239 = scmp.lt.s32.totalorder %s238, 15
        %s240 = scalar_select %p239, %s238, 15
        %p241 = scmp.lt.s32.totalorder %s23, 0
        %s242 = scalar_select %p241, %s23, 0
        %s243 = sadd.s32 %s242, %s240
        %s244 = smul.addr %s243, 4
        %s245 = scalar_lea.vmem %s1, %s244
        %s246 = smul.u32 16, %s24
        %p247 = scmp.lt.s32.totalorder %s23, 0
        %s248 = scalar_select %p247, %s23, 0
        %s249 = scalar_lea.vmem %s2, %s248
        %s250 = smul.u32 32, %s22
        %p251 = scmp.eq.s32.totalorder %s24, 0
        // Predicated region
        $region33: #{simple_conv_forward.1} parent=31 // pred_check
          %p252 = pneg %p251
        $region34: #{simple_conv_forward.1} parent=31 // pred_check_branch
          %254 = sbr.rel (%p252) target = $region36
        $region35: #{simple_conv_forward.1} parent=31 // pred_region
          %255 = vst [vmem:[#allocation2] sm:$0xff] 0.0
          %256 = vst [vmem:[#allocation2 + $0x8] sm:$0xff] 0.0
          %257 = vst [vmem:[#allocation2 + $0x10] sm:$0xff] 0.0
          %258 = vst [vmem:[#allocation2 + $0x18] sm:$0xff] 0.0
          %259 = vst [vmem:[#allocation2 + $0x20] sm:$0xff] 0.0
          %260 = vst [vmem:[#allocation2 + $0x28] sm:$0xff] 0.0
          %261 = vst [vmem:[#allocation2 + $0x30] sm:$0xff] 0.0
          %262 = vst [vmem:[#allocation2 + $0x38] sm:$0xff] 0.0
          %263 = vst [vmem:[#allocation2 + $0x40] sm:$0xff] 0.0
          %264 = vst [vmem:[#allocation2 + $0x48] sm:$0xff] 0.0
          %265 = vst [vmem:[#allocation2 + $0x50] sm:$0xff] 0.0
          %266 = vst [vmem:[#allocation2 + $0x58] sm:$0xff] 0.0
          %267 = vst [vmem:[#allocation2 + $0x60] sm:$0xff] 0.0
          %268 = vst [vmem:[#allocation2 + $0x68] sm:$0xff] 0.0
          %269 = vst [vmem:[#allocation2 + $0x70] sm:$0xff] 0.0
          %270 = vst [vmem:[#allocation2 + $0x78] sm:$0xff] 0.0
          %271 = vst [vmem:[#allocation2 + $0x80] sm:$0xff] 0.0
          %272 = vst [vmem:[#allocation2 + $0x88] sm:$0xff] 0.0
          %273 = vst [vmem:[#allocation2 + $0x90] sm:$0xff] 0.0
          %274 = vst [vmem:[#allocation2 + $0x98] sm:$0xff] 0.0
          %275 = vst [vmem:[#allocation2 + $0xa0] sm:$0xff] 0.0
          %276 = vst [vmem:[#allocation2 + $0xa8] sm:$0xff] 0.0
          %277 = vst [vmem:[#allocation2 + $0xb0] sm:$0xff] 0.0
          %278 = vst [vmem:[#allocation2 + $0xb8] sm:$0xff] 0.0
          %279 = vst [vmem:[#allocation2 + $0xc0] sm:$0xff] 0.0
          %280 = vst [vmem:[#allocation2 + $0xc8] sm:$0xff] 0.0
          %281 = vst [vmem:[#allocation2 + $0xd0] sm:$0xff] 0.0
          %282 = vst [vmem:[#allocation2 + $0xd8] sm:$0xff] 0.0
          %283 = vst [vmem:[#allocation2 + $0xe0] sm:$0xff] 0.0
          %284 = vst [vmem:[#allocation2 + $0xe8] sm:$0xff] 0.0
          %285 = vst [vmem:[#allocation2 + $0xf0] sm:$0xff] 0.0
          %286 = vst [vmem:[#allocation2 + $0xf8] sm:$0xff] 0.0
        $region36: #{simple_conv_forward.1} parent=31 // pred_fallthru
          _
        %v287 = vld [vmem:[#allocation2] sm:$0xff]
        %v288 = vld [vmem:[#allocation2 + $0x8] sm:$0xff]
        %v289 = vld [vmem:[#allocation2 + $0x10] sm:$0xff]
        %v290 = vld [vmem:[#allocation2 + $0x18] sm:$0xff]
        %v291 = vld [vmem:[#allocation2 + $0x20] sm:$0xff]
        %v292 = vld [vmem:[#allocation2 + $0x28] sm:$0xff]
        %v293 = vld [vmem:[#allocation2 + $0x30] sm:$0xff]
        %v294 = vld [vmem:[#allocation2 + $0x38] sm:$0xff]
        %v295 = vld [vmem:[#allocation2 + $0x40] sm:$0xff]
        %v296 = vld [vmem:[#allocation2 + $0x48] sm:$0xff]
        %v297 = vld [vmem:[#allocation2 + $0x50] sm:$0xff]
        %v298 = vld [vmem:[#allocation2 + $0x58] sm:$0xff]
        %v299 = vld [vmem:[#allocation2 + $0x60] sm:$0xff]
        %v300 = vld [vmem:[#allocation2 + $0x68] sm:$0xff]
        %v301 = vld [vmem:[#allocation2 + $0x70] sm:$0xff]
        %v302 = vld [vmem:[#allocation2 + $0x78] sm:$0xff]
        %v303 = vld [vmem:[#allocation2 + $0x80] sm:$0xff]
        %v304 = vld [vmem:[#allocation2 + $0x88] sm:$0xff]
        %v305 = vld [vmem:[#allocation2 + $0x90] sm:$0xff]
        %v306 = vld [vmem:[#allocation2 + $0x98] sm:$0xff]
        %v307 = vld [vmem:[#allocation2 + $0xa0] sm:$0xff]
        %v308 = vld [vmem:[#allocation2 + $0xa8] sm:$0xff]
        %v309 = vld [vmem:[#allocation2 + $0xb0] sm:$0xff]
        %v310 = vld [vmem:[#allocation2 + $0xb8] sm:$0xff]
        %v311 = vld [vmem:[#allocation2 + $0xc0] sm:$0xff]
        %v312 = vld [vmem:[#allocation2 + $0xc8] sm:$0xff]
        %v313 = vld [vmem:[#allocation2 + $0xd0] sm:$0xff]
        %v314 = vld [vmem:[#allocation2 + $0xd8] sm:$0xff]
        %v315 = vld [vmem:[#allocation2 + $0xe0] sm:$0xff]
        %v316 = vld [vmem:[#allocation2 + $0xe8] sm:$0xff]
        %v317 = vld [vmem:[#allocation2 + $0xf0] sm:$0xff]
        %v318 = vld [vmem:[#allocation2 + $0xf8] sm:$0xff]
        %v319 = vld [vmem:[%s236] sm:$0xf]
        %v320 = vld [vmem:[%s236 + $0x4] sm:$0xf]
        %v321 = vld [vmem:[%s236 + $0x8] sm:$0xf]
        %v322 = vld [vmem:[%s236 + $0xc] sm:$0xf]
        %v323 = vld [vmem:[%s236 + $0x10] sm:$0xf]
        %v324 = vld [vmem:[%s236 + $0x14] sm:$0xf]
        %v325 = vld [vmem:[%s236 + $0x18] sm:$0xf]
        %v326 = vld [vmem:[%s236 + $0x1c] sm:$0xf]
        %v327 = vld [vmem:[%s236 + $0x20] sm:$0xf]
        %v328 = vld [vmem:[%s236 + $0x24] sm:$0xf]
        %v329 = vld [vmem:[%s236 + $0x28] sm:$0xf]
        %v330 = vld [vmem:[%s236 + $0x2c] sm:$0xf]
        %v331 = vld [vmem:[%s236 + $0x30] sm:$0xf]
        %v332 = vld [vmem:[%s236 + $0x34] sm:$0xf]
        %v333 = vld [vmem:[%s236 + $0x38] sm:$0xf]
        %v334 = vld [vmem:[%s236 + $0x3c] sm:$0xf]
        %v335 = vld [vmem:[%s236 + $0x40] sm:$0xf]
        %v336 = vld [vmem:[%s236 + $0x44] sm:$0xf]
        %v337 = vld [vmem:[%s236 + $0x48] sm:$0xf]
        %v338 = vld [vmem:[%s236 + $0x4c] sm:$0xf]
        %v339 = vld [vmem:[%s236 + $0x50] sm:$0xf]
        %v340 = vld [vmem:[%s236 + $0x54] sm:$0xf]
        %v341 = vld [vmem:[%s236 + $0x58] sm:$0xf]
        %v342 = vld [vmem:[%s236 + $0x5c] sm:$0xf]
        %v343 = vld [vmem:[%s236 + $0x60] sm:$0xf]
        %v344 = vld [vmem:[%s236 + $0x64] sm:$0xf]
        %v345 = vld [vmem:[%s236 + $0x68] sm:$0xf]
        %v346 = vld [vmem:[%s236 + $0x6c] sm:$0xf]
        %v347 = vld [vmem:[%s236 + $0x70] sm:$0xf]
        %v348 = vld [vmem:[%s236 + $0x74] sm:$0xf]
        %v349 = vld [vmem:[%s236 + $0x78] sm:$0xf]
        %v350 = vld [vmem:[%s236 + $0x7c] sm:$0xf]
        %v351 = vld [vmem:[%s245] sm:$0xf]
        %v352 = vld [vmem:[%s245 + $0x4] sm:$0xf]
        %v353 = vld [vmem:[%s245 + $0x8] sm:$0xf]
        %v354 = vld [vmem:[%s245 + $0xc] sm:$0xf]
        %v355 = vld [vmem:[%s245 + $0x10] sm:$0xf]
        %v356 = vld [vmem:[%s245 + $0x14] sm:$0xf]
        %v357 = vld [vmem:[%s245 + $0x18] sm:$0xf]
        %v358 = vld [vmem:[%s245 + $0x1c] sm:$0xf]
        %v359 = vld [vmem:[%s245 + $0x20] sm:$0xf]
        %v360 = vld [vmem:[%s245 + $0x24] sm:$0xf]
        %v361 = vld [vmem:[%s245 + $0x28] sm:$0xf]
        %v362 = vld [vmem:[%s245 + $0x2c] sm:$0xf]
        %v363 = vld [vmem:[%s245 + $0x30] sm:$0xf]
        %v364 = vld [vmem:[%s245 + $0x34] sm:$0xf]
        %v365 = vld [vmem:[%s245 + $0x38] sm:$0xf]
        %v366 = vld [vmem:[%s245 + $0x3c] sm:$0xf]
        %v399 = vunpack.c.l.b16 %v319
        %v400 = vunpack.c.l.b16 %v320
        %v401 = vunpack.c.l.b16 %v321
        %v402 = vunpack.c.l.b16 %v322
        %v403 = vunpack.c.l.b16 %v323
        %v404 = vunpack.c.l.b16 %v324
        %v405 = vunpack.c.l.b16 %v325
        %v406 = vunpack.c.l.b16 %v326
        %v407 = vunpack.c.l.b16 %v327
        %v408 = vunpack.c.l.b16 %v328
        %v409 = vunpack.c.l.b16 %v329
        %v410 = vunpack.c.l.b16 %v330
        %v411 = vunpack.c.l.b16 %v331
        %v412 = vunpack.c.l.b16 %v332
        %v413 = vunpack.c.l.b16 %v333
        %v414 = vunpack.c.l.b16 %v334
        %v415 = vunpack.c.l.b16 %v335
        %v416 = vunpack.c.l.b16 %v336
        %v417 = vunpack.c.l.b16 %v337
        %v418 = vunpack.c.l.b16 %v338
        %v419 = vunpack.c.l.b16 %v339
        %v420 = vunpack.c.l.b16 %v340
        %v421 = vunpack.c.l.b16 %v341
        %v422 = vunpack.c.l.b16 %v342
        %v423 = vunpack.c.l.b16 %v343
        %v424 = vunpack.c.l.b16 %v344
        %v425 = vunpack.c.l.b16 %v345
        %v426 = vunpack.c.l.b16 %v346
        %v427 = vunpack.c.l.b16 %v347
        %v428 = vunpack.c.l.b16 %v348
        %v429 = vunpack.c.l.b16 %v349
        %v430 = vunpack.c.l.b16 %v350
        %v431 = vpack.c.b16 %v400, %v399
        %v432 = vpack.c.b16 %v402, %v401
        %v433 = vpack.c.b16 %v404, %v403
        %v434 = vpack.c.b16 %v406, %v405
        %v435 = vpack.c.b16 %v408, %v407
        %v436 = vpack.c.b16 %v410, %v409
        %v437 = vpack.c.b16 %v412, %v411
        %v438 = vpack.c.b16 %v414, %v413
        %v439 = vpack.c.b16 %v416, %v415
        %v440 = vpack.c.b16 %v418, %v417
        %v441 = vpack.c.b16 %v420, %v419
        %v442 = vpack.c.b16 %v422, %v421
        %v443 = vpack.c.b16 %v424, %v423
        %v444 = vpack.c.b16 %v426, %v425
        %v445 = vpack.c.b16 %v428, %v427
        %v446 = vpack.c.b16 %v430, %v429
        %v479 = vunpack.c.l.b16 %v351
        %v480 = vunpack.c.l.b16 %v352
        %v481 = vunpack.c.l.b16 %v353
        %v482 = vunpack.c.l.b16 %v354
        %v483 = vunpack.c.l.b16 %v355
        %v484 = vunpack.c.l.b16 %v356
        %v485 = vunpack.c.l.b16 %v357
        %v486 = vunpack.c.l.b16 %v358
        %v487 = vunpack.c.l.b16 %v359
        %v488 = vunpack.c.l.b16 %v360
        %v489 = vunpack.c.l.b16 %v361
        %v490 = vunpack.c.l.b16 %v362
        %v491 = vunpack.c.l.b16 %v363
        %v492 = vunpack.c.l.b16 %v364
        %v493 = vunpack.c.l.b16 %v365
        %v494 = vunpack.c.l.b16 %v366
        %v495 = vpack.c.b16 %v480, %v479
        %v496 = vpack.c.b16 %v482, %v481
        %v497 = vpack.c.b16 %v484, %v483
        %v498 = vpack.c.b16 %v486, %v485
        %v499 = vpack.c.b16 %v488, %v487
        %v500 = vpack.c.b16 %v490, %v489
        %v501 = vpack.c.b16 %v492, %v491
        %v502 = vpack.c.b16 %v494, %v493
        %511 = vmatpush.bf16.msra.mxu0 %v502
        %512 = vmatpush.bf16.msra.mxu0 %v501
        %513 = vmatpush.bf16.msra.mxu0 %v500
        %514 = vmatpush.bf16.msra.mxu0 %v499
        %515 = vmatpush.bf16.msra.mxu0 %v498
        %516 = vmatpush.bf16.msra.mxu0 %v497
        %517 = vmatpush.bf16.msra.mxu0 %v496
        %518 = vmatpush.bf16.msra.mxu0 %v495
        %519 = vmatmul.bf16.gmra.mxu0 %v431
        %v520 = vpop.f32.mrf.mxu0
        %v521 = vadd.f32 0.0, %v520
        %v522 = vpop.f32.mrf.mxu0
        %v523 = vadd.f32 0.0, %v522
        %524 = vmatmul.bf16.gmra.mxu0 %v432
        %v525 = vpop.f32.mrf.mxu0
        %v526 = vadd.f32 0.0, %v525
        %v527 = vpop.f32.mrf.mxu0
        %v528 = vadd.f32 0.0, %v527
        %529 = vmatmul.bf16.gmra.mxu0 %v433
        %v530 = vpop.f32.mrf.mxu0
        %v531 = vadd.f32 0.0, %v530
        %v532 = vpop.f32.mrf.mxu0
        %v533 = vadd.f32 0.0, %v532
        %534 = vmatmul.bf16.gmra.mxu0 %v434
        %v535 = vpop.f32.mrf.mxu0
        %v536 = vadd.f32 0.0, %v535
        %v537 = vpop.f32.mrf.mxu0
        %v538 = vadd.f32 0.0, %v537
        %539 = vmatmul.bf16.gmra.mxu0 %v435
        %v540 = vpop.f32.mrf.mxu0
        %v541 = vadd.f32 0.0, %v540
        %v542 = vpop.f32.mrf.mxu0
        %v543 = vadd.f32 0.0, %v542
        %544 = vmatmul.bf16.gmra.mxu0 %v436
        %v545 = vpop.f32.mrf.mxu0
        %v546 = vadd.f32 0.0, %v545
        %v547 = vpop.f32.mrf.mxu0
        %v548 = vadd.f32 0.0, %v547
        %549 = vmatmul.bf16.gmra.mxu0 %v437
        %v550 = vpop.f32.mrf.mxu0
        %v551 = vadd.f32 0.0, %v550
        %v552 = vpop.f32.mrf.mxu0
        %v553 = vadd.f32 0.0, %v552
        %554 = vmatmul.bf16.gmra.mxu0 %v438
        %v555 = vpop.f32.mrf.mxu0
        %v556 = vadd.f32 0.0, %v555
        %v557 = vpop.f32.mrf.mxu0
        %v558 = vadd.f32 0.0, %v557
        %559 = vmatmul.bf16.gmra.mxu0 %v439
        %v560 = vpop.f32.mrf.mxu0
        %v561 = vadd.f32 0.0, %v560
        %v562 = vpop.f32.mrf.mxu0
        %v563 = vadd.f32 0.0, %v562
        %564 = vmatmul.bf16.gmra.mxu0 %v440
        %v565 = vpop.f32.mrf.mxu0
        %v566 = vadd.f32 0.0, %v565
        %v567 = vpop.f32.mrf.mxu0
        %v568 = vadd.f32 0.0, %v567
        %569 = vmatmul.bf16.gmra.mxu0 %v441
        %v570 = vpop.f32.mrf.mxu0
        %v571 = vadd.f32 0.0, %v570
        %v572 = vpop.f32.mrf.mxu0
        %v573 = vadd.f32 0.0, %v572
        %574 = vmatmul.bf16.gmra.mxu0 %v442
        %v575 = vpop.f32.mrf.mxu0
        %v576 = vadd.f32 0.0, %v575
        %v577 = vpop.f32.mrf.mxu0
        %v578 = vadd.f32 0.0, %v577
        %579 = vmatmul.bf16.gmra.mxu0 %v443
        %v580 = vpop.f32.mrf.mxu0
        %v581 = vadd.f32 0.0, %v580
        %v582 = vpop.f32.mrf.mxu0
        %v583 = vadd.f32 0.0, %v582
        %584 = vmatmul.bf16.gmra.mxu0 %v444
        %v585 = vpop.f32.mrf.mxu0
        %v586 = vadd.f32 0.0, %v585
        %v587 = vpop.f32.mrf.mxu0
        %v588 = vadd.f32 0.0, %v587
        %589 = vmatmul.bf16.gmra.mxu0 %v445
        %v590 = vpop.f32.mrf.mxu0
        %v591 = vadd.f32 0.0, %v590
        %v592 = vpop.f32.mrf.mxu0
        %v593 = vadd.f32 0.0, %v592
        %594 = vmatmul.bf16.gmra.mxu0 %v446
        %v595 = vpop.f32.mrf.mxu0
        %v596 = vadd.f32 0.0, %v595
        %v597 = vpop.f32.mrf.mxu0
        %v598 = vadd.f32 0.0, %v597
        %599 = vdwg.mxu0
        %v600 = vadd.f32 %v287, %v521
        %v601 = vadd.f32 %v288, %v523
        %v602 = vadd.f32 %v289, %v526
        %v603 = vadd.f32 %v290, %v528
        %v604 = vadd.f32 %v291, %v531
        %v605 = vadd.f32 %v292, %v533
        %v606 = vadd.f32 %v293, %v536
        %v607 = vadd.f32 %v294, %v538
        %v608 = vadd.f32 %v295, %v541
        %v609 = vadd.f32 %v296, %v543
        %v610 = vadd.f32 %v297, %v546
        %v611 = vadd.f32 %v298, %v548
        %v612 = vadd.f32 %v299, %v551
        %v613 = vadd.f32 %v300, %v553
        %v614 = vadd.f32 %v301, %v556
        %v615 = vadd.f32 %v302, %v558
        %v616 = vadd.f32 %v303, %v561
        %v617 = vadd.f32 %v304, %v563
        %v618 = vadd.f32 %v305, %v566
        %v619 = vadd.f32 %v306, %v568
        %v620 = vadd.f32 %v307, %v571
        %v621 = vadd.f32 %v308, %v573
        %v622 = vadd.f32 %v309, %v576
        %v623 = vadd.f32 %v310, %v578
        %v624 = vadd.f32 %v311, %v581
        %v625 = vadd.f32 %v312, %v583
        %v626 = vadd.f32 %v313, %v586
        %v627 = vadd.f32 %v314, %v588
        %v628 = vadd.f32 %v315, %v591
        %v629 = vadd.f32 %v316, %v593
        %v630 = vadd.f32 %v317, %v596
        %v631 = vadd.f32 %v318, %v598
        %632 = vst [vmem:[#allocation2] sm:$0xff] %v600
        %633 = vst [vmem:[#allocation2 + $0x8] sm:$0xff] %v601
        %634 = vst [vmem:[#allocation2 + $0x10] sm:$0xff] %v602
        %635 = vst [vmem:[#allocation2 + $0x18] sm:$0xff] %v603
        %636 = vst [vmem:[#allocation2 + $0x20] sm:$0xff] %v604
        %637 = vst [vmem:[#allocation2 + $0x28] sm:$0xff] %v605
        %638 = vst [vmem:[#allocation2 + $0x30] sm:$0xff] %v606
        %639 = vst [vmem:[#allocation2 + $0x38] sm:$0xff] %v607
        %640 = vst [vmem:[#allocation2 + $0x40] sm:$0xff] %v608
        %641 = vst [vmem:[#allocation2 + $0x48] sm:$0xff] %v609
        %642 = vst [vmem:[#allocation2 + $0x50] sm:$0xff] %v610
        %643 = vst [vmem:[#allocation2 + $0x58] sm:$0xff] %v611
        %644 = vst [vmem:[#allocation2 + $0x60] sm:$0xff] %v612
        %645 = vst [vmem:[#allocation2 + $0x68] sm:$0xff] %v613
        %646 = vst [vmem:[#allocation2 + $0x70] sm:$0xff] %v614
        %647 = vst [vmem:[#allocation2 + $0x78] sm:$0xff] %v615
        %648 = vst [vmem:[#allocation2 + $0x80] sm:$0xff] %v616
        %649 = vst [vmem:[#allocation2 + $0x88] sm:$0xff] %v617
        %650 = vst [vmem:[#allocation2 + $0x90] sm:$0xff] %v618
        %651 = vst [vmem:[#allocation2 + $0x98] sm:$0xff] %v619
        %652 = vst [vmem:[#allocation2 + $0xa0] sm:$0xff] %v620
        %653 = vst [vmem:[#allocation2 + $0xa8] sm:$0xff] %v621
        %654 = vst [vmem:[#allocation2 + $0xb0] sm:$0xff] %v622
        %655 = vst [vmem:[#allocation2 + $0xb8] sm:$0xff] %v623
        %656 = vst [vmem:[#allocation2 + $0xc0] sm:$0xff] %v624
        %657 = vst [vmem:[#allocation2 + $0xc8] sm:$0xff] %v625
        %658 = vst [vmem:[#allocation2 + $0xd0] sm:$0xff] %v626
        %659 = vst [vmem:[#allocation2 + $0xd8] sm:$0xff] %v627
        %660 = vst [vmem:[#allocation2 + $0xe0] sm:$0xff] %v628
        %661 = vst [vmem:[#allocation2 + $0xe8] sm:$0xff] %v629
        %662 = vst [vmem:[#allocation2 + $0xf0] sm:$0xff] %v630
        %663 = vst [vmem:[#allocation2 + $0xf8] sm:$0xff] %v631
        // Predicated region
        $region37: #{simple_conv_forward.1} parent=31 // pred_check
          %p664 = pneg %p251
        $region38: #{simple_conv_forward.1} parent=31 // pred_check_branch
          %666 = sbr.rel (%p664) target = $region40
        $region39: #{simple_conv_forward.1} parent=31 // pred_region
          %v667 = vld [vmem:[#allocation2] sm:$0xff]
          %v668 = vld [vmem:[#allocation2 + $0x8] sm:$0xff]
          %v669 = vld [vmem:[#allocation2 + $0x10] sm:$0xff]
          %v670 = vld [vmem:[#allocation2 + $0x18] sm:$0xff]
          %v671 = vld [vmem:[#allocation2 + $0x20] sm:$0xff]
          %v672 = vld [vmem:[#allocation2 + $0x28] sm:$0xff]
          %v673 = vld [vmem:[#allocation2 + $0x30] sm:$0xff]
          %v674 = vld [vmem:[#allocation2 + $0x38] sm:$0xff]
          %v675 = vld [vmem:[#allocation2 + $0x40] sm:$0xff]
          %v676 = vld [vmem:[#allocation2 + $0x48] sm:$0xff]
          %v677 = vld [vmem:[#allocation2 + $0x50] sm:$0xff]
          %v678 = vld [vmem:[#allocation2 + $0x58] sm:$0xff]
          %v679 = vld [vmem:[#allocation2 + $0x60] sm:$0xff]
          %v680 = vld [vmem:[#allocation2 + $0x68] sm:$0xff]
          %v681 = vld [vmem:[#allocation2 + $0x70] sm:$0xff]
          %v682 = vld [vmem:[#allocation2 + $0x78] sm:$0xff]
          %v683 = vld [vmem:[#allocation2 + $0x80] sm:$0xff]
          %v684 = vld [vmem:[#allocation2 + $0x88] sm:$0xff]
          %v685 = vld [vmem:[#allocation2 + $0x90] sm:$0xff]
          %v686 = vld [vmem:[#allocation2 + $0x98] sm:$0xff]
          %v687 = vld [vmem:[#allocation2 + $0xa0] sm:$0xff]
          %v688 = vld [vmem:[#allocation2 + $0xa8] sm:$0xff]
          %v689 = vld [vmem:[#allocation2 + $0xb0] sm:$0xff]
          %v690 = vld [vmem:[#allocation2 + $0xb8] sm:$0xff]
          %v691 = vld [vmem:[#allocation2 + $0xc0] sm:$0xff]
          %v692 = vld [vmem:[#allocation2 + $0xc8] sm:$0xff]
          %v693 = vld [vmem:[#allocation2 + $0xd0] sm:$0xff]
          %v694 = vld [vmem:[#allocation2 + $0xd8] sm:$0xff]
          %v695 = vld [vmem:[#allocation2 + $0xe0] sm:$0xff]
          %v696 = vld [vmem:[#allocation2 + $0xe8] sm:$0xff]
          %v697 = vld [vmem:[#allocation2 + $0xf0] sm:$0xff]
          %v698 = vld [vmem:[#allocation2 + $0xf8] sm:$0xff]
          %v699 = vld [vmem:[%s249] sm:$0x1]
          %v701 = vperm.slane %v699, 0
          %v703 = vadd.f32 %v667, %v701
          %v704 = vadd.f32 %v668, %v701
          %v705 = vadd.f32 %v669, %v701
          %v706 = vadd.f32 %v670, %v701
          %v707 = vadd.f32 %v671, %v701
          %v708 = vadd.f32 %v672, %v701
          %v709 = vadd.f32 %v673, %v701
          %v710 = vadd.f32 %v674, %v701
          %v711 = vadd.f32 %v675, %v701
          %v712 = vadd.f32 %v676, %v701
          %v713 = vadd.f32 %v677, %v701
          %v714 = vadd.f32 %v678, %v701
          %v715 = vadd.f32 %v679, %v701
          %v716 = vadd.f32 %v680, %v701
          %v717 = vadd.f32 %v681, %v701
          %v718 = vadd.f32 %v682, %v701
          %v719 = vadd.f32 %v683, %v701
          %v720 = vadd.f32 %v684, %v701
          %v721 = vadd.f32 %v685, %v701
          %v722 = vadd.f32 %v686, %v701
          %v723 = vadd.f32 %v687, %v701
          %v724 = vadd.f32 %v688, %v701
          %v725 = vadd.f32 %v689, %v701
          %v726 = vadd.f32 %v690, %v701
          %v727 = vadd.f32 %v691, %v701
          %v728 = vadd.f32 %v692, %v701
          %v729 = vadd.f32 %v693, %v701
          %v730 = vadd.f32 %v694, %v701
          %v731 = vadd.f32 %v695, %v701
          %v732 = vadd.f32 %v696, %v701
          %v733 = vadd.f32 %v697, %v701
          %v734 = vadd.f32 %v698, %v701
          %v735 = vmin.f32 %v703, 30.0
          %v736 = vmin.f32 %v704, 30.0
          %v737 = vmin.f32 %v705, 30.0
          %v738 = vmin.f32 %v706, 30.0
          %v739 = vmin.f32 %v707, 30.0
          %v740 = vmin.f32 %v708, 30.0
          %v741 = vmin.f32 %v709, 30.0
          %v742 = vmin.f32 %v710, 30.0
          %v743 = vmin.f32 %v711, 30.0
          %v744 = vmin.f32 %v712, 30.0
          %v745 = vmin.f32 %v713, 30.0
          %v746 = vmin.f32 %v714, 30.0
          %v747 = vmin.f32 %v715, 30.0
          %v748 = vmin.f32 %v716, 30.0
          %v749 = vmin.f32 %v717, 30.0
          %v750 = vmin.f32 %v718, 30.0
          %v751 = vmin.f32 %v719, 30.0
          %v752 = vmin.f32 %v720, 30.0
          %v753 = vmin.f32 %v721, 30.0
          %v754 = vmin.f32 %v722, 30.0
          %v755 = vmin.f32 %v723, 30.0
          %v756 = vmin.f32 %v724, 30.0
          %v757 = vmin.f32 %v725, 30.0
          %v758 = vmin.f32 %v726, 30.0
          %v759 = vmin.f32 %v727, 30.0
          %v760 = vmin.f32 %v728, 30.0
          %v761 = vmin.f32 %v729, 30.0
          %v762 = vmin.f32 %v730, 30.0
          %v763 = vmin.f32 %v731, 30.0
          %v764 = vmin.f32 %v732, 30.0
          %v765 = vmin.f32 %v733, 30.0
          %v766 = vmin.f32 %v734, 30.0
          %v767 = vmul.f32 %v735, 1.442695
          %v768 = vpow.pop %v767
          %v769 = vmul.f32 %v736, 1.442695
          %v770 = vpow.pop %v769
          %v771 = vmul.f32 %v737, 1.442695
          %v772 = vpow.pop %v771
          %v773 = vmul.f32 %v738, 1.442695
          %v774 = vpow.pop %v773
          %v775 = vmul.f32 %v739, 1.442695
          %v776 = vpow.pop %v775
          %v777 = vmul.f32 %v740, 1.442695
          %v778 = vpow.pop %v777
          %v779 = vmul.f32 %v741, 1.442695
          %v780 = vpow.pop %v779
          %v781 = vmul.f32 %v742, 1.442695
          %v782 = vpow.pop %v781
          %v783 = vmul.f32 %v743, 1.442695
          %v784 = vpow.pop %v783
          %v785 = vmul.f32 %v744, 1.442695
          %v786 = vpow.pop %v785
          %v787 = vmul.f32 %v745, 1.442695
          %v788 = vpow.pop %v787
          %v789 = vmul.f32 %v746, 1.442695
          %v790 = vpow.pop %v789
          %v791 = vmul.f32 %v747, 1.442695
          %v792 = vpow.pop %v791
          %v793 = vmul.f32 %v748, 1.442695
          %v794 = vpow.pop %v793
          %v795 = vmul.f32 %v749, 1.442695
          %v796 = vpow.pop %v795
          %v797 = vmul.f32 %v750, 1.442695
          %v798 = vpow.pop %v797
          %v799 = vmul.f32 %v751, 1.442695
          %v800 = vpow.pop %v799
          %v801 = vmul.f32 %v752, 1.442695
          %v802 = vpow.pop %v801
          %v803 = vmul.f32 %v753, 1.442695
          %v804 = vpow.pop %v803
          %v805 = vmul.f32 %v754, 1.442695
          %v806 = vpow.pop %v805
          %v807 = vmul.f32 %v755, 1.442695
          %v808 = vpow.pop %v807
          %v809 = vmul.f32 %v756, 1.442695
          %v810 = vpow.pop %v809
          %v811 = vmul.f32 %v757, 1.442695
          %v812 = vpow.pop %v811
          %v813 = vmul.f32 %v758, 1.442695
          %v814 = vpow.pop %v813
          %v815 = vmul.f32 %v759, 1.442695
          %v816 = vpow.pop %v815
          %v817 = vmul.f32 %v760, 1.442695
          %v818 = vpow.pop %v817
          %v819 = vmul.f32 %v761, 1.442695
          %v820 = vpow.pop %v819
          %v821 = vmul.f32 %v762, 1.442695
          %v822 = vpow.pop %v821
          %v823 = vmul.f32 %v763, 1.442695
          %v824 = vpow.pop %v823
          %v825 = vmul.f32 %v764, 1.442695
          %v826 = vpow.pop %v825
          %v827 = vmul.f32 %v765, 1.442695
          %v828 = vpow.pop %v827
          %v829 = vmul.f32 %v766, 1.442695
          %v830 = vpow.pop %v829
          %v831 = vadd.f32 %v768, 1.0
          %v832 = vadd.f32 %v770, 1.0
          %v833 = vadd.f32 %v772, 1.0
          %v834 = vadd.f32 %v774, 1.0
          %v835 = vadd.f32 %v776, 1.0
          %v836 = vadd.f32 %v778, 1.0
          %v837 = vadd.f32 %v780, 1.0
          %v838 = vadd.f32 %v782, 1.0
          %v839 = vadd.f32 %v784, 1.0
          %v840 = vadd.f32 %v786, 1.0
          %v841 = vadd.f32 %v788, 1.0
          %v842 = vadd.f32 %v790, 1.0
          %v843 = vadd.f32 %v792, 1.0
          %v844 = vadd.f32 %v794, 1.0
          %v845 = vadd.f32 %v796, 1.0
          %v846 = vadd.f32 %v798, 1.0
          %v847 = vadd.f32 %v800, 1.0
          %v848 = vadd.f32 %v802, 1.0
          %v849 = vadd.f32 %v804, 1.0
          %v850 = vadd.f32 %v806, 1.0
          %v851 = vadd.f32 %v808, 1.0
          %v852 = vadd.f32 %v810, 1.0
          %v853 = vadd.f32 %v812, 1.0
          %v854 = vadd.f32 %v814, 1.0
          %v855 = vadd.f32 %v816, 1.0
          %v856 = vadd.f32 %v818, 1.0
          %v857 = vadd.f32 %v820, 1.0
          %v858 = vadd.f32 %v822, 1.0
          %v859 = vadd.f32 %v824, 1.0
          %v860 = vadd.f32 %v826, 1.0
          %v861 = vadd.f32 %v828, 1.0
          %v862 = vadd.f32 %v830, 1.0
          %v863 = vmul.f32 %v831, %v831
          %v864 = vmul.f32 %v832, %v832
          %v865 = vmul.f32 %v833, %v833
          %v866 = vmul.f32 %v834, %v834
          %v867 = vmul.f32 %v835, %v835
          %v868 = vmul.f32 %v836, %v836
          %v869 = vmul.f32 %v837, %v837
          %v870 = vmul.f32 %v838, %v838
          %v871 = vmul.f32 %v839, %v839
          %v872 = vmul.f32 %v840, %v840
          %v873 = vmul.f32 %v841, %v841
          %v874 = vmul.f32 %v842, %v842
          %v875 = vmul.f32 %v843, %v843
          %v876 = vmul.f32 %v844, %v844
          %v877 = vmul.f32 %v845, %v845
          %v878 = vmul.f32 %v846, %v846
          %v879 = vmul.f32 %v847, %v847
          %v880 = vmul.f32 %v848, %v848
          %v881 = vmul.f32 %v849, %v849
          %v882 = vmul.f32 %v850, %v850
          %v883 = vmul.f32 %v851, %v851
          %v884 = vmul.f32 %v852, %v852
          %v885 = vmul.f32 %v853, %v853
          %v886 = vmul.f32 %v854, %v854
          %v887 = vmul.f32 %v855, %v855
          %v888 = vmul.f32 %v856, %v856
          %v889 = vmul.f32 %v857, %v857
          %v890 = vmul.f32 %v858, %v858
          %v891 = vmul.f32 %v859, %v859
          %v892 = vmul.f32 %v860, %v860
          %v893 = vmul.f32 %v861, %v861
          %v894 = vmul.f32 %v862, %v862
          %v895 = vsub.f32 %v863, 1.0
          %v896 = vsub.f32 %v864, 1.0
          %v897 = vsub.f32 %v865, 1.0
          %v898 = vsub.f32 %v866, 1.0
          %v899 = vsub.f32 %v867, 1.0
          %v900 = vsub.f32 %v868, 1.0
          %v901 = vsub.f32 %v869, 1.0
          %v902 = vsub.f32 %v870, 1.0
          %v903 = vsub.f32 %v871, 1.0
          %v904 = vsub.f32 %v872, 1.0
          %v905 = vsub.f32 %v873, 1.0
          %v906 = vsub.f32 %v874, 1.0
          %v907 = vsub.f32 %v875, 1.0
          %v908 = vsub.f32 %v876, 1.0
          %v909 = vsub.f32 %v877, 1.0
          %v910 = vsub.f32 %v878, 1.0
          %v911 = vsub.f32 %v879, 1.0
          %v912 = vsub.f32 %v880, 1.0
          %v913 = vsub.f32 %v881, 1.0
          %v914 = vsub.f32 %v882, 1.0
          %v915 = vsub.f32 %v883, 1.0
          %v916 = vsub.f32 %v884, 1.0
          %v917 = vsub.f32 %v885, 1.0
          %v918 = vsub.f32 %v886, 1.0
          %v919 = vsub.f32 %v887, 1.0
          %v920 = vsub.f32 %v888, 1.0
          %v921 = vsub.f32 %v889, 1.0
          %v922 = vsub.f32 %v890, 1.0
          %v923 = vsub.f32 %v891, 1.0
          %v924 = vsub.f32 %v892, 1.0
          %v925 = vsub.f32 %v893, 1.0
          %v926 = vsub.f32 %v894, 1.0
          %v927 = vmul.f32 %v703, %v895
          %v928 = vmul.f32 %v704, %v896
          %v929 = vmul.f32 %v705, %v897
          %v930 = vmul.f32 %v706, %v898
          %v931 = vmul.f32 %v707, %v899
          %v932 = vmul.f32 %v708, %v900
          %v933 = vmul.f32 %v709, %v901
          %v934 = vmul.f32 %v710, %v902
          %v935 = vmul.f32 %v711, %v903
          %v936 = vmul.f32 %v712, %v904
          %v937 = vmul.f32 %v713, %v905
          %v938 = vmul.f32 %v714, %v906
          %v939 = vmul.f32 %v715, %v907
          %v940 = vmul.f32 %v716, %v908
          %v941 = vmul.f32 %v717, %v909
          %v942 = vmul.f32 %v718, %v910
          %v943 = vmul.f32 %v719, %v911
          %v944 = vmul.f32 %v720, %v912
          %v945 = vmul.f32 %v721, %v913
          %v946 = vmul.f32 %v722, %v914
          %v947 = vmul.f32 %v723, %v915
          %v948 = vmul.f32 %v724, %v916
          %v949 = vmul.f32 %v725, %v917
          %v950 = vmul.f32 %v726, %v918
          %v951 = vmul.f32 %v727, %v919
          %v952 = vmul.f32 %v728, %v920
          %v953 = vmul.f32 %v729, %v921
          %v954 = vmul.f32 %v730, %v922
          %v955 = vmul.f32 %v731, %v923
          %v956 = vmul.f32 %v732, %v924
          %v957 = vmul.f32 %v733, %v925
          %v958 = vmul.f32 %v734, %v926
          %v959 = vadd.f32 %v863, 1.0
          %v960 = vadd.f32 %v864, 1.0
          %v961 = vadd.f32 %v865, 1.0
          %v962 = vadd.f32 %v866, 1.0
          %v963 = vadd.f32 %v867, 1.0
          %v964 = vadd.f32 %v868, 1.0
          %v965 = vadd.f32 %v869, 1.0
          %v966 = vadd.f32 %v870, 1.0
          %v967 = vadd.f32 %v871, 1.0
          %v968 = vadd.f32 %v872, 1.0
          %v969 = vadd.f32 %v873, 1.0
          %v970 = vadd.f32 %v874, 1.0
          %v971 = vadd.f32 %v875, 1.0
          %v972 = vadd.f32 %v876, 1.0
          %v973 = vadd.f32 %v877, 1.0
          %v974 = vadd.f32 %v878, 1.0
          %v975 = vadd.f32 %v879, 1.0
          %v976 = vadd.f32 %v880, 1.0
          %v977 = vadd.f32 %v881, 1.0
          %v978 = vadd.f32 %v882, 1.0
          %v979 = vadd.f32 %v883, 1.0
          %v980 = vadd.f32 %v884, 1.0
          %v981 = vadd.f32 %v885, 1.0
          %v982 = vadd.f32 %v886, 1.0
          %v983 = vadd.f32 %v887, 1.0
          %v984 = vadd.f32 %v888, 1.0
          %v985 = vadd.f32 %v889, 1.0
          %v986 = vadd.f32 %v890, 1.0
          %v987 = vadd.f32 %v891, 1.0
          %v988 = vadd.f32 %v892, 1.0
          %v989 = vadd.f32 %v893, 1.0
          %v990 = vadd.f32 %v894, 1.0
          %v991 = vrcp.pop %v959
          %v992 = vrcp.pop %v960
          %v993 = vrcp.pop %v961
          %v994 = vrcp.pop %v962
          %v995 = vrcp.pop %v963
          %v996 = vrcp.pop %v964
          %v997 = vrcp.pop %v965
          %v998 = vrcp.pop %v966
          %v999 = vrcp.pop %v967
          %v1000 = vrcp.pop %v968
          %v1001 = vrcp.pop %v969
          %v1002 = vrcp.pop %v970
          %v1003 = vrcp.pop %v971
          %v1004 = vrcp.pop %v972
          %v1005 = vrcp.pop %v973
          %v1006 = vrcp.pop %v974
          %v1007 = vrcp.pop %v975
          %v1008 = vrcp.pop %v976
          %v1009 = vrcp.pop %v977
          %v1010 = vrcp.pop %v978
          %v1011 = vrcp.pop %v979
          %v1012 = vrcp.pop %v980
          %v1013 = vrcp.pop %v981
          %v1014 = vrcp.pop %v982
          %v1015 = vrcp.pop %v983
          %v1016 = vrcp.pop %v984
          %v1017 = vrcp.pop %v985
          %v1018 = vrcp.pop %v986
          %v1019 = vrcp.pop %v987
          %v1020 = vrcp.pop %v988
          %v1021 = vrcp.pop %v989
          %v1022 = vrcp.pop %v990
          %v1023 = vmul.f32 %v927, %v991
          %v1024 = vmul.f32 %v928, %v992
          %v1025 = vmul.f32 %v929, %v993
          %v1026 = vmul.f32 %v930, %v994
          %v1027 = vmul.f32 %v931, %v995
          %v1028 = vmul.f32 %v932, %v996
          %v1029 = vmul.f32 %v933, %v997
          %v1030 = vmul.f32 %v934, %v998
          %v1031 = vmul.f32 %v935, %v999
          %v1032 = vmul.f32 %v936, %v1000
          %v1033 = vmul.f32 %v937, %v1001
          %v1034 = vmul.f32 %v938, %v1002
          %v1035 = vmul.f32 %v939, %v1003
          %v1036 = vmul.f32 %v940, %v1004
          %v1037 = vmul.f32 %v941, %v1005
          %v1038 = vmul.f32 %v942, %v1006
          %v1039 = vmul.f32 %v943, %v1007
          %v1040 = vmul.f32 %v944, %v1008
          %v1041 = vmul.f32 %v945, %v1009
          %v1042 = vmul.f32 %v946, %v1010
          %v1043 = vmul.f32 %v947, %v1011
          %v1044 = vmul.f32 %v948, %v1012
          %v1045 = vmul.f32 %v949, %v1013
          %v1046 = vmul.f32 %v950, %v1014
          %v1047 = vmul.f32 %v951, %v1015
          %v1048 = vmul.f32 %v952, %v1016
          %v1049 = vmul.f32 %v953, %v1017
          %v1050 = vmul.f32 %v954, %v1018
          %v1051 = vmul.f32 %v955, %v1019
          %v1052 = vmul.f32 %v956, %v1020
          %v1053 = vmul.f32 %v957, %v1021
          %v1054 = vmul.f32 %v958, %v1022
          %1055 = vst [vmem:[%s228] sm:$0xff] %v1023
          %1056 = vst [vmem:[%s228 + $0x8] sm:$0xff] %v1024
          %1057 = vst [vmem:[%s228 + $0x10] sm:$0xff] %v1025
          %1058 = vst [vmem:[%s228 + $0x18] sm:$0xff] %v1026
          %1059 = vst [vmem:[%s228 + $0x20] sm:$0xff] %v1027
          %1060 = vst [vmem:[%s228 + $0x28] sm:$0xff] %v1028
          %1061 = vst [vmem:[%s228 + $0x30] sm:$0xff] %v1029
          %1062 = vst [vmem:[%s228 + $0x38] sm:$0xff] %v1030
          %1063 = vst [vmem:[%s228 + $0x40] sm:$0xff] %v1031
          %1064 = vst [vmem:[%s228 + $0x48] sm:$0xff] %v1032
          %1065 = vst [vmem:[%s228 + $0x50] sm:$0xff] %v1033
          %1066 = vst [vmem:[%s228 + $0x58] sm:$0xff] %v1034
          %1067 = vst [vmem:[%s228 + $0x60] sm:$0xff] %v1035
          %1068 = vst [vmem:[%s228 + $0x68] sm:$0xff] %v1036
          %1069 = vst [vmem:[%s228 + $0x70] sm:$0xff] %v1037
          %1070 = vst [vmem:[%s228 + $0x78] sm:$0xff] %v1038
          %1071 = vst [vmem:[%s228 + $0x80] sm:$0xff] %v1039
          %1072 = vst [vmem:[%s228 + $0x88] sm:$0xff] %v1040
          %1073 = vst [vmem:[%s228 + $0x90] sm:$0xff] %v1041
          %1074 = vst [vmem:[%s228 + $0x98] sm:$0xff] %v1042
          %1075 = vst [vmem:[%s228 + $0xa0] sm:$0xff] %v1043
          %1076 = vst [vmem:[%s228 + $0xa8] sm:$0xff] %v1044
          %1077 = vst [vmem:[%s228 + $0xb0] sm:$0xff] %v1045
          %1078 = vst [vmem:[%s228 + $0xb8] sm:$0xff] %v1046
          %1079 = vst [vmem:[%s228 + $0xc0] sm:$0xff] %v1047
          %1080 = vst [vmem:[%s228 + $0xc8] sm:$0xff] %v1048
          %1081 = vst [vmem:[%s228 + $0xd0] sm:$0xff] %v1049
          %1082 = vst [vmem:[%s228 + $0xd8] sm:$0xff] %v1050
          %1083 = vst [vmem:[%s228 + $0xe0] sm:$0xff] %v1051
          %1084 = vst [vmem:[%s228 + $0xe8] sm:$0xff] %v1052
          %1085 = vst [vmem:[%s228 + $0xf0] sm:$0xff] %v1053
          %1086 = vst [vmem:[%s228 + $0xf8] sm:$0xff] %v1054
        $region40: #{simple_conv_forward.1} parent=31 // pred_fallthru
          _
        %s1087 = sand.u32 %s128, 1
        %s1088 = scalar_lea.sflag [#allocation4], %s1087
        %s1089 = sand.u32 %s128, 1
        %s1090 = smul.addr %s1089, 256
        %s1091 = scalar_lea.vmem [#allocation3], %s1090
        // Predicated region
        $region41: #{simple_conv_forward.1} parent=31 // pred_check
          %p1092 = pneg %p138
        $region42: #{simple_conv_forward.1} parent=31 // pred_check_branch
          %1094 = sbr.rel (%p1092) target = $region44
        $region43: #{simple_conv_forward.1} parent=31 // pred_region
          %s1095 = smul.u32 32, %s22
          %1097 = vsyncadd %s1088, 0
          %s1098 = sadd.s32 %s23, %s1095
          %s1099 = smul.addr %s1098, 8
          %s1100 = scalar_lea.hbm %s3, %s1099
          %s1101 = sshll.u32 %s1091, 4
          %s1102 = int_to_ptr.vmem [resolvable:$true] %s1101
          %s1103 = sshll.u32 %s1100, 4
          %s1104 = int_to_ptr.hbm [resolvable:$true] %s1103
          %1109 = dma.vmem_to_hbm [thread:$0]  %s1102, 4096, %s1104, %s1088, 128, 128, 8
        $region44: #{simple_conv_forward.1} parent=31 // pred_fallthru
          _
      $region32: #{simple_conv_forward.1} parent=5 // pred_fallthru
        _
      %p1110 = scmp.le.s32.totalorder 2, %s12
      // Predicated region
      $region45: #{simple_conv_forward.1} parent=5 // pred_check
        %p1111 = pneg %p1110
      $region46: #{simple_conv_forward.1} parent=5 // pred_check_branch
        %1113 = sbr.rel (%p1111) target = $region48
      $region47: #{simple_conv_forward.1} parent=5 // pred_region
        %s1114 = ssub.s32 %s12, 2
        // Predicated region
        $region49: #{simple_conv_forward.1} parent=47 // pred_check
          %p1115 = pneg %p144
        $region50: #{simple_conv_forward.1} parent=47 // pred_check_branch
          %1117 = sbr.rel (%p1115) target = $region52
        $region51: #{simple_conv_forward.1} parent=47 // pred_region
          %s1118 = sand.u32 %s129, 1
          %s1119 = scalar_lea.sflag [#allocation4], %s1118
          %s1120 = sand.u32 %s129, 1
          %s1121 = smul.addr %s1120, 256
          %s1122 = scalar_lea.vmem [#allocation3], %s1121
          %1124 = dma.done %s1119, 4096
        $region52: #{simple_conv_forward.1} parent=47 // pred_fallthru
          _
      $region48: #{simple_conv_forward.1} parent=5 // pred_fallthru
        _
    $region6: #{simple_conv_forward.1} parent=1 // loop_footer
      %s16 = sadd.s32 1, %s12
    $region7: #{simple_conv_forward.1} parent=1 // loop_footer_branch
      %11 = sbr.rel target = $region3
    $region8: #{simple_conv_forward.1} parent=1 // loop_exit
      _
    %1125 = vsyncpa [#allocation4], 1
    %s1126 = scalar_lea.sflag [#allocation4], 1
    %1127 = vsyncpa %s1126, 1

</llo_original>
